<compile_context>
chip_gen: v7x
topology: tpu7x:2x2x1
jax: 0.10.0
libtpu: 0.0.40
codegen_flags: <defaults>
</compile_context>

<pallas_src>
import jax
import jax.numpy as jnp
from jax.experimental import pallas as pl
from jax.experimental.pallas import tpu as pltpu

_TM = 256        # row tile (multiple of 8; big enough to amortize step overhead)
_TN_MAX = 2048   # column tile cap (multiple of 128; keeps VMEM use small)


def _identity_kernel(x_ref, o_ref):
    # Pure pass-through: copy the current tile.
    o_ref[...] = x_ref[...]


def identity_pallas(x):
    """y = x, implemented as a tiled Pallas copy.

    Works for any rank >= 1.  The array is viewed as [M, D] with D = last dim
    (the lane axis), rows tiled at 256 and columns tiled at <= 2048.
    """
    orig_shape = x.shape
    if x.ndim == 0:
        # TODO(synk): 0-d scalar pass-through has no meaningful tiling; return as-is.
        return x

    D = orig_shape[-1]
    M = 1
    for s in orig_shape[:-1]:
        M *= s
    x2 = x.reshape(M, D)

    # Block dims: either a multiple of (8, 128) or the full array extent.
    tm = _TM if M >= _TM else M
    tn = D if D <= _TN_MAX else _TN_MAX

    grid = (pl.cdiv(M, tm), pl.cdiv(D, tn))
    out = pl.pallas_call(
        _identity_kernel,
        out_shape=jax.ShapeDtypeStruct((M, D), x.dtype),
        grid=grid,
        in_specs=[pl.BlockSpec((tm, tn), lambda i, j: (i, j))],
        out_specs=pl.BlockSpec((tm, tn), lambda i, j: (i, j)),
        compiler_params=pltpu.CompilerParams(
            dimension_semantics=("parallel", "parallel")),
    )(x2)
    return out.reshape(orig_shape)


if __name__ == "__main__":
    key = jax.random.PRNGKey(0)
    k1, k2 = jax.random.split(key)

    # Projector-style input: [batch, num_tokens, hidden].  hidden=128 keeps the
    # lane dimension fully dense (unmasked stores).
    x = jax.random.normal(k1, (2, 256, 128), jnp.float32)
    y = identity_pallas(x)
    jax.block_until_ready(y)
    assert y.shape == x.shape and y.dtype == x.dtype
    assert bool(jnp.array_equal(y, x)), "identity mismatch"

    # Ragged / odd shape: exercises the full-extent-block and cdiv edge paths.
    x_odd = jax.random.normal(k2, (3, 7, 160), jnp.float32)
    y_odd = identity_pallas(x_odd)
    jax.block_until_ready(y_odd)
    assert bool(jnp.array_equal(y_odd, x_odd)), "identity mismatch (odd shape)"

    print("KERNEL_OK")
</pallas_src>

<mosaic_0001>
module attributes {stable_mosaic.version = 11 : i64} {
  func.func @_identity_kernel(%arg0: i32, %arg1: i32, %arg2: memref<256x128xf32, #tpu.memory_space<vmem>>, %arg3: memref<256x128xf32, #tpu.memory_space<vmem>>) attributes {dimension_semantics = [#tpu.dimension_semantics<parallel>, #tpu.dimension_semantics<parallel>], iteration_bounds = array<i64: 2, 1>, scalar_prefetch = 0 : i64, scratch_operands = 0 : i64, tpu.core_type = #tpu.core_type<tc>, window_params = [{transform_indices = @transform_0, window_bounds = array<i64: 256, 128>}, {transform_indices = @transform_1, window_bounds = array<i64: 256, 128>}]} {
    %c0 = arith.constant 0 : index
    %c0_0 = arith.constant 0 : index
    %0 = vector.load %arg2[%c0, %c0_0] : memref<256x128xf32, #tpu.memory_space<vmem>>, vector<256x128xf32>
    %c0_1 = arith.constant 0 : index
    %c0_2 = arith.constant 0 : index
    %1 = vector.load %arg3[%c0_1, %c0_2] : memref<256x128xf32, #tpu.memory_space<vmem>>, vector<256x128xf32>
    tpu.vector_store %arg3[%c0_1, %c0_2], %0 {strides = array<i32>} : memref<256x128xf32, #tpu.memory_space<vmem>>, vector<256x128xf32>,
    return
  }
  func.func @transform_0(%arg0: i32, %arg1: i32) -> (i32, i32) {
    %c0_i32 = arith.constant 0 : i32
    return %arg0, %arg1 : i32, i32
  }
  func.func @transform_1(%arg0: i32, %arg1: i32) -> (i32, i32) {
    %c0_i32 = arith.constant 0 : i32
    return %arg0, %arg1 : i32, i32
  }
}

</mosaic_0001>

<llo_original>
// kernel: tpu_custom_call.1
$region0: #{tpu_custom_call.1}
  #allocation0 [shape = 'u32[]', space=smem, size = 0x4, offset = 0x4, fixed_abs, tag = 'smem constant byte address 0x4 - core index']
  #allocation1 [shape = 'u32[144,128]{1,0:T(1,128)}', space=vmem, size = 0x12000, scoped, tag = 'internal scratch']
  %s0 = inlined_call_operand.hbm [shape: f32[512,128], index: 0, kind: input, shape index: {}]
  %s1 = inlined_call_operand.hbm [shape: f32[512,128], index: 1, kind: output, shape index: {}]
  %s2 = sld [smem:[#allocation0]]
  $region41: #{tpu_custom_call.1} parent=0
    _
  %s4 = ssub.s32 1, %s2
  %s5 = scalar_select 0, %s4, %s2
  $region1: #{tpu_custom_call.1} parent=0
    #allocation2 [shape = 'u8[262144]{0}', space=vmem, size = 0x40000, scoped, tag = 'input window, operand 0']
    #allocation3 [shape = 's32[2]{0}', space=sflag, size = 0x8, scoped, tag = 'scoped memory for tpu_custom_call.1']
    #allocation4 [shape = 's32[2]{0}', space=sflag, size = 0x8, scoped, tag = 'scoped memory for tpu_custom_call.1']
    #allocation5 [shape = 'u8[262144]{0}', space=vmem, size = 0x40000, scoped, tag = 'output window, operand 0']
    %6 = vsyncpa [#allocation3], 0
    %s7 = scalar_lea.sflag [#allocation3], 1
    %8 = vsyncpa %s7, 0
    %9 = vsyncpa [#allocation4], 0
    %s10 = scalar_lea.sflag [#allocation4], 1
    %11 = vsyncpa %s10, 0
    loop: start=0, step=1, limit=4
    $region2: #{tpu_custom_call.1} parent=1 // loop_pre_header
      _
    $region3: #{tpu_custom_call.1} parent=1 // loop_header
      %s13 = sphi 0, %s17
      %p14 = scmp.ge.s32.totalorder %s13, 4
      %s20 = sphi 0, %s32
      %s21 = sphi 0, %s28
      %s22 = sphi 0, %s20
      %s23 = sphi 0, %s21
      %s24 = sphi 0, %s22
      %s25 = sphi 0, %s23
      %s37 = sphi 0, %s39
      %s40 = sphi 0, %s37
      %s41 = sphi 0, %s40
      %s57 = sphi 0, %s41
      %s65 = sphi 0, %s67
      %s68 = sphi 0, %s65
      %s69 = sphi 0, %s68
      %s85 = sphi 0, %s69
    $region4: #{tpu_custom_call.1} parent=1 // loop_header_branch
      %16 = sbr.rel (%p14) target = $region8
    $region5: #{tpu_custom_call.1} parent=1 // loop_body
      %s18 = ssub.s32 %s13, 1
      %s19 = ssub.s32 %s13, 2
      %s26 = sadd.s32 1, %s21
      %p27 = scmp.ge.s32.totalorder %s26, 1
      %s28 = scalar_select %p27, 0, %s26
      %s29 = sadd.s32 1, %s20
      %s30 = scalar_select %p27, %s29, %s20
      %p31 = scmp.ge.s32.totalorder %s30, 2
      %s32 = scalar_select %p31, 0, %s30
      %s33 = ssub.s32 %s20, %s32
      %s34 = ssub.s32 %s21, %s28
      %s35 = sor.u32 %s33, %s34
      %p36 = scmp.eq.s32.totalorder %s35, 0
      %s38 = sadd.s32 %s37, 1
      %s39 = scalar_select %p36, %s37, %s38
      %p42 = pneg %p36
      %p43 = scmp.eq.s32.totalorder %s13, 1
      %p44 = por %p42, %p43
      %p45 = scmp.ne.s32.totalorder %s37, %s40
      %p46 = scmp.eq.s32.totalorder %s13, 0
      %p47 = por %p45, %p46
      %p48 = scmp.ne.s32.totalorder %s37, %s40
      %p49 = scmp.eq.s32.totalorder %s18, 1
      %p50 = por %p48, %p49
      %p51 = scmp.ne.s32.totalorder %s40, %s41
      %p52 = scmp.eq.s32.totalorder %s18, 0
      %p53 = por %p51, %p52
      %p54 = scmp.ne.s32.totalorder %s40, %s41
      %p55 = scmp.eq.s32.totalorder %s19, 1
      %p56 = por %p54, %p55
      %p58 = scmp.ne.s32.totalorder %s41, %s57
      %p59 = scmp.eq.s32.totalorder %s19, 0
      %p60 = por %p58, %p59
      %s61 = ssub.s32 %s20, %s32
      %s62 = ssub.s32 %s21, %s28
      %s63 = sor.u32 %s61, %s62
      %p64 = scmp.eq.s32.totalorder %s63, 0
      %s66 = sadd.s32 %s65, 1
      %s67 = scalar_select %p64, %s65, %s66
      %p70 = pneg %p64
      %p71 = scmp.eq.s32.totalorder %s13, 1
      %p72 = por %p70, %p71
      %p73 = scmp.ne.s32.totalorder %s65, %s68
      %p74 = scmp.eq.s32.totalorder %s13, 0
      %p75 = por %p73, %p74
      %p76 = scmp.ne.s32.totalorder %s65, %s68
      %p77 = scmp.eq.s32.totalorder %s18, 1
      %p78 = por %p76, %p77
      %p79 = scmp.ne.s32.totalorder %s68, %s69
      %p80 = scmp.eq.s32.totalorder %s18, 0
      %p81 = por %p79, %p80
      %p82 = scmp.ne.s32.totalorder %s68, %s69
      %p83 = scmp.eq.s32.totalorder %s19, 1
      %p84 = por %p82, %p83
      %p86 = scmp.ne.s32.totalorder %s69, %s85
      %p87 = scmp.eq.s32.totalorder %s19, 0
      %p88 = por %p86, %p87
      %p89 = scmp.le.s32.totalorder 1, %s13
      %p90 = scmp.lt.s32.totalorder %s13, 3
      %p91 = pnand %p89, %p90
      %p92 = pneg %p91
      // Predicated region
      $region9: #{tpu_custom_call.1} parent=5 // pred_check
        _
      $region10: #{tpu_custom_call.1} parent=5 // pred_check_branch
        %94 = sbr.rel (%p91) target = $region12
      $region11: #{tpu_custom_call.1} parent=5 // pred_region
        %s95 = ssub.s32 %s13, 1
      $region12: #{tpu_custom_call.1} parent=5 // pred_fallthru
        _
      %p96 = scmp.lt.s32.totalorder %s13, 2
      // Predicated region
      $region13: #{tpu_custom_call.1} parent=5 // pred_check
        %p97 = pneg %p96
      $region14: #{tpu_custom_call.1} parent=5 // pred_check_branch
        %99 = sbr.rel (%p97) target = $region16
      $region15: #{tpu_custom_call.1} parent=5 // pred_region
        // Predicated region
        $region17: #{tpu_custom_call.1} parent=15 // pred_check
          %p100 = pneg %p47
        $region18: #{tpu_custom_call.1} parent=15 // pred_check_branch
          %102 = sbr.rel (%p100) target = $region20
        $region19: #{tpu_custom_call.1} parent=15 // pred_region
          %s103 = sand.u32 %s37, 1
          %s104 = scalar_lea.sflag [#allocation3], %s103
          %s105 = sand.u32 %s37, 1
          %s106 = smul.addr %s105, 256
          %s107 = scalar_lea.vmem [#allocation2], %s106
          %s108 = smul.u32 32, %s20
          %s110 = ssub.s32 4096, 4096
          %111 = vsyncadd %s104, %s110
          %s112 = sadd.s32 %s21, %s108
          %s113 = smul.addr %s112, 128
          %s114 = scalar_lea.hbm %s0, %s113
          %s115 = sshll.u32 %s107, 4
          %s116 = int_to_ptr.vmem [resolvable:$true] %s115
          %121 = dma.hbm_to_vmem [thread:$0]  %s114, 4096, %s116, %s104, 128, 128, 8
        $region20: #{tpu_custom_call.1} parent=15 // pred_fallthru
          _
      $region16: #{tpu_custom_call.1} parent=5 // pred_fallthru
        _
      %p122 = scmp.le.s32.totalorder 1, %s13
      %p123 = scmp.lt.s32.totalorder %s13, 3
      %p124 = pnand %p122, %p123
      %p125 = pneg %p124
      // Predicated region
      $region21: #{tpu_custom_call.1} parent=5 // pred_check
        _
      $region22: #{tpu_custom_call.1} parent=5 // pred_check_branch
        %127 = sbr.rel (%p124) target = $region24
      $region23: #{tpu_custom_call.1} parent=5 // pred_region
        %s128 = ssub.s32 %s13, 1
        %s129 = sand.u32 %s40, 1
        %s130 = scalar_lea.sflag [#allocation3], %s129
        %s131 = sand.u32 %s40, 1
        %s132 = smul.addr %s131, 256
        %s133 = scalar_lea.vmem [#allocation2], %s132
        // Predicated region
        $region25: #{tpu_custom_call.1} parent=23 // pred_check
          %p134 = pneg %p53
        $region26: #{tpu_custom_call.1} parent=23 // pred_check_branch
          %136 = sbr.rel (%p134) target = $region28
        $region27: #{tpu_custom_call.1} parent=23 // pred_region
          %137 = dma.done %s130, 4096
        $region28: #{tpu_custom_call.1} parent=23 // pred_fallthru
          _
        %s138 = sand.u32 %s40, 1
        %s139 = scalar_lea.sflag [#allocation3], %s138
        %s140 = sand.u32 %s40, 1
        %s141 = smul.addr %s140, 256
        %s142 = scalar_lea.vmem [#allocation2], %s141
        %p143 = pneg %p53
        %p144 = pneg %p50
        %p145 = pneg %p81
        %p146 = pneg %p78
        %s147 = sand.u32 %s68, 1
        %s148 = scalar_lea.sflag [#allocation4], %s147
        %s149 = sand.u32 %s68, 1
        %s150 = smul.addr %s149, 256
        %s151 = scalar_lea.vmem [#allocation5], %s150
        %s152 = smul.u32 32, %s22
        %s153 = smul.u32 32, %s22
        %v154 = vld [vmem:[%s133] sm:$0xff]
        %v155 = vld [vmem:[%s133 + $0x8] sm:$0xff]
        %v156 = vld [vmem:[%s133 + $0x10] sm:$0xff]
        %v157 = vld [vmem:[%s133 + $0x18] sm:$0xff]
        %v158 = vld [vmem:[%s133 + $0x20] sm:$0xff]
        %v159 = vld [vmem:[%s133 + $0x28] sm:$0xff]
        %v160 = vld [vmem:[%s133 + $0x30] sm:$0xff]
        %v161 = vld [vmem:[%s133 + $0x38] sm:$0xff]
        %v162 = vld [vmem:[%s133 + $0x40] sm:$0xff]
        %v163 = vld [vmem:[%s133 + $0x48] sm:$0xff]
        %v164 = vld [vmem:[%s133 + $0x50] sm:$0xff]
        %v165 = vld [vmem:[%s133 + $0x58] sm:$0xff]
        %v166 = vld [vmem:[%s133 + $0x60] sm:$0xff]
        %v167 = vld [vmem:[%s133 + $0x68] sm:$0xff]
        %v168 = vld [vmem:[%s133 + $0x70] sm:$0xff]
        %v169 = vld [vmem:[%s133 + $0x78] sm:$0xff]
        %v170 = vld [vmem:[%s133 + $0x80] sm:$0xff]
        %v171 = vld [vmem:[%s133 + $0x88] sm:$0xff]
        %v172 = vld [vmem:[%s133 + $0x90] sm:$0xff]
        %v173 = vld [vmem:[%s133 + $0x98] sm:$0xff]
        %v174 = vld [vmem:[%s133 + $0xa0] sm:$0xff]
        %v175 = vld [vmem:[%s133 + $0xa8] sm:$0xff]
        %v176 = vld [vmem:[%s133 + $0xb0] sm:$0xff]
        %v177 = vld [vmem:[%s133 + $0xb8] sm:$0xff]
        %v178 = vld [vmem:[%s133 + $0xc0] sm:$0xff]
        %v179 = vld [vmem:[%s133 + $0xc8] sm:$0xff]
        %v180 = vld [vmem:[%s133 + $0xd0] sm:$0xff]
        %v181 = vld [vmem:[%s133 + $0xd8] sm:$0xff]
        %v182 = vld [vmem:[%s133 + $0xe0] sm:$0xff]
        %v183 = vld [vmem:[%s133 + $0xe8] sm:$0xff]
        %v184 = vld [vmem:[%s133 + $0xf0] sm:$0xff]
        %v185 = vld [vmem:[%s133 + $0xf8] sm:$0xff]
        %186 = vst [vmem:[%s151] sm:$0xff] %v154
        %187 = vst [vmem:[%s151 + $0x8] sm:$0xff] %v155
        %188 = vst [vmem:[%s151 + $0x10] sm:$0xff] %v156
        %189 = vst [vmem:[%s151 + $0x18] sm:$0xff] %v157
        %190 = vst [vmem:[%s151 + $0x20] sm:$0xff] %v158
        %191 = vst [vmem:[%s151 + $0x28] sm:$0xff] %v159
        %192 = vst [vmem:[%s151 + $0x30] sm:$0xff] %v160
        %193 = vst [vmem:[%s151 + $0x38] sm:$0xff] %v161
        %194 = vst [vmem:[%s151 + $0x40] sm:$0xff] %v162
        %195 = vst [vmem:[%s151 + $0x48] sm:$0xff] %v163
        %196 = vst [vmem:[%s151 + $0x50] sm:$0xff] %v164
        %197 = vst [vmem:[%s151 + $0x58] sm:$0xff] %v165
        %198 = vst [vmem:[%s151 + $0x60] sm:$0xff] %v166
        %199 = vst [vmem:[%s151 + $0x68] sm:$0xff] %v167
        %200 = vst [vmem:[%s151 + $0x70] sm:$0xff] %v168
        %201 = vst [vmem:[%s151 + $0x78] sm:$0xff] %v169
        %202 = vst [vmem:[%s151 + $0x80] sm:$0xff] %v170
        %203 = vst [vmem:[%s151 + $0x88] sm:$0xff] %v171
        %204 = vst [vmem:[%s151 + $0x90] sm:$0xff] %v172
        %205 = vst [vmem:[%s151 + $0x98] sm:$0xff] %v173
        %206 = vst [vmem:[%s151 + $0xa0] sm:$0xff] %v174
        %207 = vst [vmem:[%s151 + $0xa8] sm:$0xff] %v175
        %208 = vst [vmem:[%s151 + $0xb0] sm:$0xff] %v176
        %209 = vst [vmem:[%s151 + $0xb8] sm:$0xff] %v177
        %210 = vst [vmem:[%s151 + $0xc0] sm:$0xff] %v178
        %211 = vst [vmem:[%s151 + $0xc8] sm:$0xff] %v179
        %212 = vst [vmem:[%s151 + $0xd0] sm:$0xff] %v180
        %213 = vst [vmem:[%s151 + $0xd8] sm:$0xff] %v181
        %214 = vst [vmem:[%s151 + $0xe0] sm:$0xff] %v182
        %215 = vst [vmem:[%s151 + $0xe8] sm:$0xff] %v183
        %216 = vst [vmem:[%s151 + $0xf0] sm:$0xff] %v184
        %217 = vst [vmem:[%s151 + $0xf8] sm:$0xff] %v185
        %s218 = sand.u32 %s68, 1
        %s219 = scalar_lea.sflag [#allocation4], %s218
        %s220 = sand.u32 %s68, 1
        %s221 = smul.addr %s220, 256
        %s222 = scalar_lea.vmem [#allocation5], %s221
        // Predicated region
        $region29: #{tpu_custom_call.1} parent=23 // pred_check
          %p223 = pneg %p78
        $region30: #{tpu_custom_call.1} parent=23 // pred_check_branch
          %225 = sbr.rel (%p223) target = $region32
        $region31: #{tpu_custom_call.1} parent=23 // pred_region
          %s226 = smul.u32 32, %s22
          %s228 = ssub.s32 4096, 4096
          %229 = vsyncadd %s219, %s228
          %s230 = sadd.s32 %s23, %s226
          %s231 = smul.addr %s230, 128
          %s232 = scalar_lea.hbm %s1, %s231
          %s233 = sshll.u32 %s222, 4
          %s234 = int_to_ptr.vmem [resolvable:$true] %s233
          %239 = dma.vmem_to_hbm [thread:$0]  %s234, 4096, %s232, %s219, 128, 128, 8
        $region32: #{tpu_custom_call.1} parent=23 // pred_fallthru
          _
      $region24: #{tpu_custom_call.1} parent=5 // pred_fallthru
        _
      %p240 = scmp.le.s32.totalorder 2, %s13
      // Predicated region
      $region33: #{tpu_custom_call.1} parent=5 // pred_check
        %p241 = pneg %p240
      $region34: #{tpu_custom_call.1} parent=5 // pred_check_branch
        %243 = sbr.rel (%p241) target = $region36
      $region35: #{tpu_custom_call.1} parent=5 // pred_region
        %s244 = ssub.s32 %s13, 2
        // Predicated region
        $region37: #{tpu_custom_call.1} parent=35 // pred_check
          %p245 = pneg %p84
        $region38: #{tpu_custom_call.1} parent=35 // pred_check_branch
          %247 = sbr.rel (%p245) target = $region40
        $region39: #{tpu_custom_call.1} parent=35 // pred_region
          %s248 = sand.u32 %s69, 1
          %s249 = scalar_lea.sflag [#allocation4], %s248
          %s250 = sand.u32 %s69, 1
          %s251 = smul.addr %s250, 256
          %s252 = scalar_lea.vmem [#allocation5], %s251
          %253 = dma.done %s249, 4096
        $region40: #{tpu_custom_call.1} parent=35 // pred_fallthru
          _
      $region36: #{tpu_custom_call.1} parent=5 // pred_fallthru
        _
    $region6: #{tpu_custom_call.1} parent=1 // loop_footer
      %s17 = sadd.s32 1, %s13
    $region7: #{tpu_custom_call.1} parent=1 // loop_footer_branch
      %12 = sbr.rel target = $region3
    $region8: #{tpu_custom_call.1} parent=1 // loop_exit
      _
    %254 = vsyncpa [#allocation3], 1
    %s255 = scalar_lea.sflag [#allocation3], 1
    %256 = vsyncpa %s255, 1
    %257 = vsyncpa [#allocation4], 1
    %s258 = scalar_lea.sflag [#allocation4], 1
    %259 = vsyncpa %s258, 1

</llo_original>
